<compile_context>
chip_gen: v7x
topology: tpu7x:2x2x1
jax: 0.10.0
libtpu: 0.0.40
codegen_flags: <defaults>
</compile_context>

<pallas_src>
import functools

import jax
import jax.numpy as jnp
from jax.experimental import pallas as pl
from jax.experimental.pallas import tpu as pltpu


def _brc_kernel(x_ref, scale_ref, shift_ref, w_ref, b_ref, out_ref,
                fext_ref, rhs_ref, *, width, cin, act_lane):
    # x_ref:     (B_TILE, Cin, H*W)        images, channels-first, spatial flattened into lanes
    # scale_ref: (Cin, 1)                  folded BN scale  gamma / sqrt(var + eps)      (f32)
    # shift_ref: (Cin, 1)                  folded BN shift  beta - mean * scale          (f32)
    # w_ref:     (Cout, 9*Cin_pad)         conv weights, K ordered (dy*3 + dx)*Cin_pad + ci, f32,
    #                                      zero for ci >= Cin
    # b_ref:     (Cout, 1)                 conv bias (f32)
    # out_ref:   (B_TILE, Cout, H*W)       NCHW-flat output block (lane-dense: H*W % 128 == 0)
    # fext_ref:  (B_TILE, Cin_pad, EXT)    VMEM scratch: zero-guarded flat activation rows
    # rhs_ref:   (9*Cin_pad, B_TILE*H*W)   VMEM scratch: im2col RHS, sublane/lane aligned writes
    b_tile = x_ref.shape[0]
    hw = x_ref.shape[2]
    w_pix = width
    cin_pad = fext_ref.shape[1]

    # ---- zero guards / pad channels (a few vregs of vst; robust under megacore grid splitting) ----
    fext_ref[...] = jnp.zeros_like(fext_ref)

    # ---- BN (folded per-channel affine) + ReLU on the VPU, f32, stored at a lane-aligned offset ----
    scale = scale_ref[...]
    shift = shift_ref[...]
    for b in range(b_tile):
        x_b = x_ref[b].astype(jnp.float32)                               # (Cin, H*W)
        act_b = jnp.maximum(x_b * scale + shift, 0.0)
        fext_ref[b, 0:cin, act_lane:act_lane + hw] = act_b               # act_lane % 128 == 0

    # Static lane masks: zero the columns where a +-1 width shift wraps into the adjacent row
    # (this implements the conv's zero padding along W).
    col = jax.lax.broadcasted_iota(jnp.int32, (1, hw), 1) % w_pix
    not_left = col != 0                                                  # kills dx == 0 wrap at w == 0
    not_right = col != (w_pix - 1)                                       # kills dx == 2 wrap at w == W-1
    zero = jnp.zeros((), jnp.float32)

    # ---- im2col: 9 contiguous lane-shifted slices -> aligned writes into the RHS scratch ----
    base = act_lane - (w_pix + 1)                                        # tap (0,0) offset
    for t in range(9):
        dy, dx = divmod(t, 3)
        s = base + dy * w_pix + dx
        for b in range(b_tile):
            tap = fext_ref[b, :, s:s + hw]                               # (Cin_pad, H*W)
            if dx == 0:
                tap = jnp.where(not_left, tap, zero)
            elif dx == 2:
                tap = jnp.where(not_right, tap, zero)
            # sublane offset t*Cin_pad (multiple of 8) and lane offset b*H*W (multiple of 128).
            rhs_ref[t * cin_pad:(t + 1) * cin_pad, b * hw:(b + 1) * hw] = tap

    # ---- single fused MXU matmul (f32 x f32 -> f32) + bias ----
    acc = jnp.dot(w_ref[...], rhs_ref[...], preferred_element_type=jnp.float32)  # (Cout, B_TILE*H*W)
    acc = acc + b_ref[...]

    # ---- lane-aligned per-image stores into the lane-dense NCHW-flat output block ----
    for b in range(b_tile):
        out_ref[b] = acc[:, b * hw:(b + 1) * hw].astype(out_ref.dtype)


def brc_pack_weights(conv_w, conv_b, cin_pad):
    """Repack conv weights once (hoist out of the per-call path when weights are reused)."""
    cout, cin, kh, kw = conv_w.shape
    w_r = jnp.transpose(conv_w, (0, 2, 3, 1))                            # (Cout, 3, 3, Cin)
    w_r = jnp.pad(w_r, ((0, 0), (0, 0), (0, 0), (0, cin_pad - cin)))     # zero-pad K rows per tap
    w2 = w_r.reshape(cout, kh * kw * cin_pad).astype(jnp.float32)        # (Cout, 9*Cin_pad)
    bias = conv_b.reshape(cout, 1).astype(jnp.float32)
    return w2, bias


def _pick_b_tile(n, per_image_vmem_bytes, budget_bytes=8 << 20):
    """Largest divisor of n that fits the VMEM budget while keeping >= 2 grid steps (v7x 2 TCs)."""
    cap = max(1, budget_bytes // max(per_image_vmem_bytes, 1))
    best = 1
    for bt in range(1, n + 1):
        if n % bt != 0 or bt > cap:
            continue
        if n == 1 or n // bt >= 2:
            best = bt
    return best


def brc_forward(x_nchw, gamma, beta, conv_w, conv_b, eps=1e-5, out_dtype=None, packed=None):
    """BatchNorm2d (training-mode batch stats) -> ReLU -> Conv2d(3x3, stride 1, pad 1)."""
    n, cin, h, w = x_nchw.shape
    cout = conv_w.shape[0]
    hw = h * w
    assert conv_w.shape[1:] == (cin, 3, 3), "kernel specialized to 3x3 conv (module default)"
    assert hw % 128 == 0, "H*W must be a multiple of 128 for the lane-dense flat-spatial layout"
    assert w >= 2
    out_dtype = x_nchw.dtype if out_dtype is None else out_dtype

    # Batch statistics over (N, H, W) per channel, in ONE pass over x (sum and sum-of-squares
    # together) so XLA only reads the input once for the stats.  Biased variance, matching
    # PyTorch's train()-mode normalization.
    m1 = jnp.mean(x_nchw, axis=(0, 2, 3))
    m2 = jnp.mean(jnp.square(x_nchw), axis=(0, 2, 3))
    var = m2 - jnp.square(m1)
    inv = gamma / jnp.sqrt(var + eps)
    scale = inv.astype(jnp.float32).reshape(cin, 1)
    shift = (beta - m1 * inv).astype(jnp.float32).reshape(cin, 1)

    # Sublane-aligned tap height; K = 9*cin_pad stays <= 128 (one MXU K-pass on all generations)
    # for cin <= 14, which covers the small-channel regime this kernel targets.
    cin_pad = -(-cin // 8) * 8
    if packed is None:
        packed = brc_pack_weights(conv_w, conv_b, cin_pad)
    w2, bias = packed

    # Zero-guarded flat row layout: act starts at a lane-aligned offset, with >= W+1 zero guard
    # lanes on both sides (the dy = 0/2 taps read into the guards => conv zero padding along H).
    act_lane = -(-(w + 1) // 128) * 128
    ext_len = -(-(act_lane + hw + w + 1) // 128) * 128

    # Per-image VMEM (f32): double-buffered x/out blocks + fext + im2col RHS scratch.
    per_img = 4 * (2 * (cin + cout) * hw + cin_pad * ext_len + 9 * cin_pad * hw)
    b_tile = _pick_b_tile(n, per_img)

    # Free reshapes only -- no NCHW <-> NHWC transposes in the wrapper.
    x_flat = x_nchw.reshape(n, cin, hw)

    kernel = functools.partial(_brc_kernel, width=w, cin=cin, act_lane=act_lane)

    out_flat = pl.pallas_call(
        kernel,
        out_shape=jax.ShapeDtypeStruct((n, cout, hw), out_dtype),
        grid_spec=pltpu.PrefetchScalarGridSpec(
            num_scalar_prefetch=0,
            grid=(n // b_tile,),
            in_specs=[
                pl.BlockSpec((b_tile, cin, hw), lambda i: (i, 0, 0)),
                pl.BlockSpec((cin, 1), lambda i: (0, 0)),
                pl.BlockSpec((cin, 1), lambda i: (0, 0)),
                pl.BlockSpec((cout, 9 * cin_pad), lambda i: (0, 0)),
                pl.BlockSpec((cout, 1), lambda i: (0, 0)),
            ],
            out_specs=pl.BlockSpec((b_tile, cout, hw), lambda i: (i, 0, 0)),
            scratch_shapes=[
                pltpu.VMEM((b_tile, cin_pad, ext_len), jnp.float32),     # zero-guarded act rows
                pltpu.VMEM((9 * cin_pad, b_tile * hw), jnp.float32),     # aligned im2col RHS
            ],
        ),
        compiler_params=pltpu.CompilerParams(dimension_semantics=("parallel",)),
    )(x_flat, scale, shift, w2, bias)

    return out_flat.reshape(n, cout, h, w)


def brc_reference(x_nchw, gamma, beta, conv_w, conv_b, eps=1e-5):
    mean = jnp.mean(x_nchw, axis=(0, 2, 3), keepdims=True)
    var = jnp.var(x_nchw, axis=(0, 2, 3), keepdims=True)
    xn = (x_nchw - mean) / jnp.sqrt(var + eps)
    xn = xn * gamma.reshape(1, -1, 1, 1) + beta.reshape(1, -1, 1, 1)
    xn = jnp.maximum(xn, 0.0)
    out = jax.lax.conv_general_dilated(
        xn, conv_w, window_strides=(1, 1), padding=((1, 1), (1, 1)),
        dimension_numbers=("NCHW", "OIHW", "NCHW"),
        precision=jax.lax.Precision.HIGHEST)
    return out + conv_b.reshape(1, -1, 1, 1)


if __name__ == "__main__":
    N, Cin, Cout, H, W = 2, 4, 8, 16, 16

    key = jax.random.PRNGKey(0)
    kx, kw, kb = jax.random.split(key, 3)

    x = jax.random.normal(kx, (N, Cin, H, W), dtype=jnp.float32)

    # Deterministic parameter init (mirrors PyTorch defaults / kaiming-uniform bound).
    gamma = jnp.ones((Cin,), jnp.float32)      # BatchNorm2d weight default
    beta = jnp.zeros((Cin,), jnp.float32)      # BatchNorm2d bias default
    fan_in = Cin * 3 * 3
    bound = 1.0 / jnp.sqrt(jnp.float32(fan_in))
    conv_w = jax.random.uniform(kw, (Cout, Cin, 3, 3), jnp.float32, -bound, bound)
    conv_b = jax.random.uniform(kb, (Cout,), jnp.float32, -bound, bound)

    out = brc_forward(x, gamma, beta, conv_w, conv_b)
    out = jax.block_until_ready(out)

    ref = brc_reference(x, gamma, beta, conv_w, conv_b)
    assert out.shape == (N, Cout, H, W)
    # f32 MXU operands + f32 accumulation -> tight tolerance vs the f32 reference.
    assert jnp.allclose(out, ref, rtol=1e-2, atol=1e-2), "mismatch vs reference"

    print("KERNEL_OK")
</pallas_src>

<mosaic_0001>
module attributes {stable_mosaic.version = 11 : i64} {
  func.func @_brc_kernel(%arg0: i32, %arg1: memref<1x4x256xf32, #tpu.memory_space<vmem>>, %arg2: memref<4x1xf32, #tpu.memory_space<vmem>>, %arg3: memref<4x1xf32, #tpu.memory_space<vmem>>, %arg4: memref<8x72xf32, #tpu.memory_space<vmem>>, %arg5: memref<8x1xf32, #tpu.memory_space<vmem>>, %arg6: memref<1x8x256xf32, #tpu.memory_space<vmem>>, %arg7: memref<1x8x512xf32, #tpu.memory_space<vmem>>, %arg8: memref<72x256xf32, #tpu.memory_space<vmem>>) attributes {dimension_semantics = [#tpu.dimension_semantics<parallel>], iteration_bounds = array<i64: 2>, scalar_prefetch = 0 : i64, scratch_operands = 2 : i64, tpu.core_type = #tpu.core_type<tc>, window_params = [{transform_indices = @transform_0, window_bounds = array<i64: 1, 4, 256>}, {pipeline_mode = #tpu.pipeline_mode<synchronous>, transform_indices = @transform_1, window_bounds = array<i64: 4, 1>}, {pipeline_mode = #tpu.pipeline_mode<synchronous>, transform_indices = @transform_2, window_bounds = array<i64: 4, 1>}, {pipeline_mode = #tpu.pipeline_mode<synchronous>, transform_indices = @transform_3, window_bounds = array<i64: 8, 72>}, {pipeline_mode = #tpu.pipeline_mode<synchronous>, transform_indices = @transform_4, window_bounds = array<i64: 8, 1>}, {transform_indices = @transform_5, window_bounds = array<i64: 1, 8, 256>}]} {
    %cst = arith.constant 0.000000e+00 : f32
    %0 = vector.broadcast %cst : f32 to vector<1x8x512xf32>
    %c0 = arith.constant 0 : index
    %c0_0 = arith.constant 0 : index
    %c0_1 = arith.constant 0 : index
    %1 = vector.load %arg7[%c0, %c0_0, %c0_1] : memref<1x8x512xf32, #tpu.memory_space<vmem>>, vector<1x8x512xf32>
    tpu.vector_store %arg7[%c0, %c0_0, %c0_1], %0 {strides = array<i32>} : memref<1x8x512xf32, #tpu.memory_space<vmem>>, vector<1x8x512xf32>,
    %c0_2 = arith.constant 0 : index
    %c0_3 = arith.constant 0 : index
    %2 = vector.load %arg2[%c0_2, %c0_3] : memref<4x1xf32, #tpu.memory_space<vmem>>, vector<4x1xf32>
    %c0_4 = arith.constant 0 : index
    %c0_5 = arith.constant 0 : index
    %3 = vector.load %arg3[%c0_4, %c0_5] : memref<4x1xf32, #tpu.memory_space<vmem>>, vector<4x1xf32>
    %c0_6 = arith.constant 0 : index
    %c0_7 = arith.constant 0 : index
    %c0_8 = arith.constant 0 : index
    %4 = vector.load %arg1[%c0_6, %c0_7, %c0_8] : memref<1x4x256xf32, #tpu.memory_space<vmem>>, vector<1x4x256xf32>
    %5 = vector.shape_cast %4 : vector<1x4x256xf32> to vector<4x256xf32>
    %6 = vector.broadcast %2 : vector<4x1xf32> to vector<4x256xf32>
    %7 = arith.mulf %5, %6 : vector<4x256xf32>
    %8 = vector.broadcast %3 : vector<4x1xf32> to vector<4x256xf32>
    %9 = arith.addf %7, %8 : vector<4x256xf32>
    %cst_9 = arith.constant 0.000000e+00 : f32
    %10 = vector.broadcast %cst_9 : f32 to vector<4x256xf32>
    %11 = arith.maximumf %9, %10 : vector<4x256xf32>
    %c0_10 = arith.constant 0 : index
    %c0_11 = arith.constant 0 : index
    %c128 = arith.constant 128 : index
    %12 = vector.load %arg7[%c0_10, %c0_11, %c128] : memref<1x8x512xf32, #tpu.memory_space<vmem>>, vector<1x4x256xf32>
    %13 = vector.shape_cast %12 : vector<1x4x256xf32> to vector<4x256xf32>
    %14 = vector.shape_cast %11 : vector<4x256xf32> to vector<1x4x256xf32>
    tpu.vector_store %arg7[%c0_10, %c0_11, %c128], %14 {strides = array<i32>} : memref<1x8x512xf32, #tpu.memory_space<vmem>>, vector<1x4x256xf32>,
    %15 = tpu.iota {dimensions = array<i32: 1>} : vector<1x256xi32>
    %c16_i32 = arith.constant 16 : i32
    %c0_i32 = arith.constant 0 : i32
    %16 = arith.cmpi eq, %c16_i32, %c0_i32 : i32
    %c1_i32 = arith.constant 1 : i32
    %17 = arith.select %16, %c1_i32, %c16_i32 : i32
    %18 = vector.broadcast %17 : i32 to vector<1x256xi32>
    %19 = arith.remsi %15, %18 : vector<1x256xi32>
    %c0_i32_12 = arith.constant 0 : i32
    %20 = vector.broadcast %c0_i32_12 : i32 to vector<1x256xi32>
    %21 = arith.cmpi ne, %19, %20 : vector<1x256xi32>
    %c0_i32_13 = arith.constant 0 : i32
    %22 = vector.broadcast %c0_i32_13 : i32 to vector<1x256xi32>
    %23 = arith.cmpi slt, %19, %22 : vector<1x256xi32>
    %c0_i32_14 = arith.constant 0 : i32
    %24 = arith.cmpi slt, %17, %c0_i32_14 : i32
    %25 = vector.broadcast %24 : i1 to vector<1x256xi1>
    %26 = vector.broadcast %25 : vector<1x256xi1> to vector<1x256xi1>
    %27 = arith.xori %23, %26 : vector<1x256xi1>
    %28 = arith.andi %27, %21 : vector<1x256xi1>
    %29 = vector.broadcast %17 : i32 to vector<1x256xi32>
    %30 = arith.addi %19, %29 : vector<1x256xi32>
    %31 = arith.select %28, %30, %19 : vector<1x256xi1>, vector<1x256xi32>
    %c0_i32_15 = arith.constant 0 : i32
    %32 = vector.broadcast %c0_i32_15 : i32 to vector<1x256xi32>
    %33 = arith.cmpi ne, %31, %32 : vector<1x256xi32>
    %c15_i32 = arith.constant 15 : i32
    %34 = vector.broadcast %c15_i32 : i32 to vector<1x256xi32>
    %35 = arith.cmpi ne, %31, %34 : vector<1x256xi32>
    %c0_16 = arith.constant 0 : index
    %c0_17 = arith.constant 0 : index
    %c111 = arith.constant 111 : index
    %36 = vector.load %arg7[%c0_16, %c0_17, %c111] : memref<1x8x512xf32, #tpu.memory_space<vmem>>, vector<1x8x256xf32>
    %37 = vector.shape_cast %36 : vector<1x8x256xf32> to vector<8x256xf32>
    %cst_18 = arith.constant 0.000000e+00 : f32
    %38 = vector.shape_cast %33 : vector<1x256xi1> to vector<1x256xi1>
    %39 = vector.broadcast %38 : vector<1x256xi1> to vector<8x256xi1>
    %40 = vector.broadcast %cst_18 : f32 to vector<8x256xf32>
    %41 = arith.select %39, %37, %40 : vector<8x256xi1>, vector<8x256xf32>
    %c0_19 = arith.constant 0 : index
    %c0_20 = arith.constant 0 : index
    %42 = vector.load %arg8[%c0_19, %c0_20] : memref<72x256xf32, #tpu.memory_space<vmem>>, vector<8x256xf32>
    tpu.vector_store %arg8[%c0_19, %c0_20], %41 {strides = array<i32>} : memref<72x256xf32, #tpu.memory_space<vmem>>, vector<8x256xf32>,
    %c0_21 = arith.constant 0 : index
    %c0_22 = arith.constant 0 : index
    %c112 = arith.constant 112 : index
    %43 = vector.load %arg7[%c0_21, %c0_22, %c112] : memref<1x8x512xf32, #tpu.memory_space<vmem>>, vector<1x8x256xf32>
    %44 = vector.shape_cast %43 : vector<1x8x256xf32> to vector<8x256xf32>
    %c8 = arith.constant 8 : index
    %c0_23 = arith.constant 0 : index
    %45 = vector.load %arg8[%c8, %c0_23] : memref<72x256xf32, #tpu.memory_space<vmem>>, vector<8x256xf32>
    tpu.vector_store %arg8[%c8, %c0_23], %44 {strides = array<i32>} : memref<72x256xf32, #tpu.memory_space<vmem>>, vector<8x256xf32>,
    %c0_24 = arith.constant 0 : index
    %c0_25 = arith.constant 0 : index
    %c113 = arith.constant 113 : index
    %46 = vector.load %arg7[%c0_24, %c0_25, %c113] : memref<1x8x512xf32, #tpu.memory_space<vmem>>, vector<1x8x256xf32>
    %47 = vector.shape_cast %46 : vector<1x8x256xf32> to vector<8x256xf32>
    %cst_26 = arith.constant 0.000000e+00 : f32
    %48 = vector.shape_cast %35 : vector<1x256xi1> to vector<1x256xi1>
    %49 = vector.broadcast %48 : vector<1x256xi1> to vector<8x256xi1>
    %50 = vector.broadcast %cst_26 : f32 to vector<8x256xf32>
    %51 = arith.select %49, %47, %50 : vector<8x256xi1>, vector<8x256xf32>
    %c16 = arith.constant 16 : index
    %c0_27 = arith.constant 0 : index
    %52 = vector.load %arg8[%c16, %c0_27] : memref<72x256xf32, #tpu.memory_space<vmem>>, vector<8x256xf32>
    tpu.vector_store %arg8[%c16, %c0_27], %51 {strides = array<i32>} : memref<72x256xf32, #tpu.memory_space<vmem>>, vector<8x256xf32>,
    %c0_28 = arith.constant 0 : index
    %c0_29 = arith.constant 0 : index
    %c127 = arith.constant 127 : index
    %53 = vector.load %arg7[%c0_28, %c0_29, %c127] : memref<1x8x512xf32, #tpu.memory_space<vmem>>, vector<1x8x256xf32>
    %54 = vector.shape_cast %53 : vector<1x8x256xf32> to vector<8x256xf32>
    %cst_30 = arith.constant 0.000000e+00 : f32
    %55 = vector.shape_cast %33 : vector<1x256xi1> to vector<1x256xi1>
    %56 = vector.broadcast %55 : vector<1x256xi1> to vector<8x256xi1>
    %57 = vector.broadcast %cst_30 : f32 to vector<8x256xf32>
    %58 = arith.select %56, %54, %57 : vector<8x256xi1>, vector<8x256xf32>
    %c24 = arith.constant 24 : index
    %c0_31 = arith.constant 0 : index
    %59 = vector.load %arg8[%c24, %c0_31] : memref<72x256xf32, #tpu.memory_space<vmem>>, vector<8x256xf32>
    tpu.vector_store %arg8[%c24, %c0_31], %58 {strides = array<i32>} : memref<72x256xf32, #tpu.memory_space<vmem>>, vector<8x256xf32>,
    %c0_32 = arith.constant 0 : index
    %c0_33 = arith.constant 0 : index
    %c128_34 = arith.constant 128 : index
    %60 = vector.load %arg7[%c0_32, %c0_33, %c128_34] : memref<1x8x512xf32, #tpu.memory_space<vmem>>, vector<1x8x256xf32>
    %61 = vector.shape_cast %60 : vector<1x8x256xf32> to vector<8x256xf32>
    %c32 = arith.constant 32 : index
    %c0_35 = arith.constant 0 : index
    %62 = vector.load %arg8[%c32, %c0_35] : memref<72x256xf32, #tpu.memory_space<vmem>>, vector<8x256xf32>
    tpu.vector_store %arg8[%c32, %c0_35], %61 {strides = array<i32>} : memref<72x256xf32, #tpu.memory_space<vmem>>, vector<8x256xf32>,
    %c0_36 = arith.constant 0 : index
    %c0_37 = arith.constant 0 : index
    %c129 = arith.constant 129 : index
    %63 = vector.load %arg7[%c0_36, %c0_37, %c129] : memref<1x8x512xf32, #tpu.memory_space<vmem>>, vector<1x8x256xf32>
    %64 = vector.shape_cast %63 : vector<1x8x256xf32> to vector<8x256xf32>
    %cst_38 = arith.constant 0.000000e+00 : f32
    %65 = vector.shape_cast %35 : vector<1x256xi1> to vector<1x256xi1>
    %66 = vector.broadcast %65 : vector<1x256xi1> to vector<8x256xi1>
    %67 = vector.broadcast %cst_38 : f32 to vector<8x256xf32>
    %68 = arith.select %66, %64, %67 : vector<8x256xi1>, vector<8x256xf32>
    %c40 = arith.constant 40 : index
    %c0_39 = arith.constant 0 : index
    %69 = vector.load %arg8[%c40, %c0_39] : memref<72x256xf32, #tpu.memory_space<vmem>>, vector<8x256xf32>
    tpu.vector_store %arg8[%c40, %c0_39], %68 {strides = array<i32>} : memref<72x256xf32, #tpu.memory_space<vmem>>, vector<8x256xf32>,
    %c0_40 = arith.constant 0 : index
    %c0_41 = arith.constant 0 : index
    %c143 = arith.constant 143 : index
    %70 = vector.load %arg7[%c0_40, %c0_41, %c143] : memref<1x8x512xf32, #tpu.memory_space<vmem>>, vector<1x8x256xf32>
    %71 = vector.shape_cast %70 : vector<1x8x256xf32> to vector<8x256xf32>
    %cst_42 = arith.constant 0.000000e+00 : f32
    %72 = vector.shape_cast %33 : vector<1x256xi1> to vector<1x256xi1>
    %73 = vector.broadcast %72 : vector<1x256xi1> to vector<8x256xi1>
    %74 = vector.broadcast %cst_42 : f32 to vector<8x256xf32>
    %75 = arith.select %73, %71, %74 : vector<8x256xi1>, vector<8x256xf32>
    %c48 = arith.constant 48 : index
    %c0_43 = arith.constant 0 : index
    %76 = vector.load %arg8[%c48, %c0_43] : memref<72x256xf32, #tpu.memory_space<vmem>>, vector<8x256xf32>
    tpu.vector_store %arg8[%c48, %c0_43], %75 {strides = array<i32>} : memref<72x256xf32, #tpu.memory_space<vmem>>, vector<8x256xf32>,
    %c0_44 = arith.constant 0 : index
    %c0_45 = arith.constant 0 : index
    %c144 = arith.constant 144 : index
    %77 = vector.load %arg7[%c0_44, %c0_45, %c144] : memref<1x8x512xf32, #tpu.memory_space<vmem>>, vector<1x8x256xf32>
    %78 = vector.shape_cast %77 : vector<1x8x256xf32> to vector<8x256xf32>
    %c56 = arith.constant 56 : index
    %c0_46 = arith.constant 0 : index
    %79 = vector.load %arg8[%c56, %c0_46] : memref<72x256xf32, #tpu.memory_space<vmem>>, vector<8x256xf32>
    tpu.vector_store %arg8[%c56, %c0_46], %78 {strides = array<i32>} : memref<72x256xf32, #tpu.memory_space<vmem>>, vector<8x256xf32>,
    %c0_47 = arith.constant 0 : index
    %c0_48 = arith.constant 0 : index
    %c145 = arith.constant 145 : index
    %80 = vector.load %arg7[%c0_47, %c0_48, %c145] : memref<1x8x512xf32, #tpu.memory_space<vmem>>, vector<1x8x256xf32>
    %81 = vector.shape_cast %80 : vector<1x8x256xf32> to vector<8x256xf32>
    %cst_49 = arith.constant 0.000000e+00 : f32
    %82 = vector.shape_cast %35 : vector<1x256xi1> to vector<1x256xi1>
    %83 = vector.broadcast %82 : vector<1x256xi1> to vector<8x256xi1>
    %84 = vector.broadcast %cst_49 : f32 to vector<8x256xf32>
    %85 = arith.select %83, %81, %84 : vector<8x256xi1>, vector<8x256xf32>
    %c64 = arith.constant 64 : index
    %c0_50 = arith.constant 0 : index
    %86 = vector.load %arg8[%c64, %c0_50] : memref<72x256xf32, #tpu.memory_space<vmem>>, vector<8x256xf32>
    tpu.vector_store %arg8[%c64, %c0_50], %85 {strides = array<i32>} : memref<72x256xf32, #tpu.memory_space<vmem>>, vector<8x256xf32>,
    %c0_51 = arith.constant 0 : index
    %c0_52 = arith.constant 0 : index
    %87 = vector.load %arg4[%c0_51, %c0_52] : memref<8x72xf32, #tpu.memory_space<vmem>>, vector<8x72xf32>
    %c0_53 = arith.constant 0 : index
    %c0_54 = arith.constant 0 : index
    %88 = vector.load %arg8[%c0_53, %c0_54] : memref<72x256xf32, #tpu.memory_space<vmem>>, vector<72x256xf32>
    %cst_55 = arith.constant dense<0.000000e+00> : vector<8x256xf32>
    %89 = tpu.matmul %87, %88, %cst_55 {dimension_numbers = #tpu.dot_dimension_numbers<[1], [0], [0], [1], [0, 0, 1, 1], [], []>} : vector<8x72xf32>, vector<72x256xf32>, vector<8x256xf32> -> vector<8x256xf32>
    %c0_56 = arith.constant 0 : index
    %c0_57 = arith.constant 0 : index
    %90 = vector.load %arg5[%c0_56, %c0_57] : memref<8x1xf32, #tpu.memory_space<vmem>>, vector<8x1xf32>
    %91 = vector.broadcast %90 : vector<8x1xf32> to vector<8x256xf32>
    %92 = arith.addf %89, %91 : vector<8x256xf32>
    %c0_58 = arith.constant 0 : index
    %c0_59 = arith.constant 0 : index
    %c0_60 = arith.constant 0 : index
    %93 = vector.load %arg6[%c0_58, %c0_59, %c0_60] : memref<1x8x256xf32, #tpu.memory_space<vmem>>, vector<1x8x256xf32>
    %94 = vector.shape_cast %93 : vector<1x8x256xf32> to vector<8x256xf32>
    %95 = vector.shape_cast %92 : vector<8x256xf32> to vector<1x8x256xf32>
    tpu.vector_store %arg6[%c0_58, %c0_59, %c0_60], %95 {strides = array<i32>} : memref<1x8x256xf32, #tpu.memory_space<vmem>>, vector<1x8x256xf32>,
    return
  }
  func.func @transform_0(%arg0: i32) -> (i32, i32, i32) {
    %c0_i32 = arith.constant 0 : i32
    %c0_i32_0 = arith.constant 0 : i32
    %c0_i32_1 = arith.constant 0 : i32
    return %arg0, %c0_i32, %c0_i32_0 : i32, i32, i32
  }
  func.func @transform_1(%arg0: i32) -> (i32, i32) {
    %c0_i32 = arith.constant 0 : i32
    %c0_i32_0 = arith.constant 0 : i32
    %c0_i32_1 = arith.constant 0 : i32
    return %c0_i32, %c0_i32_0 : i32, i32
  }
  func.func @transform_2(%arg0: i32) -> (i32, i32) {
    %c0_i32 = arith.constant 0 : i32
    %c0_i32_0 = arith.constant 0 : i32
    %c0_i32_1 = arith.constant 0 : i32
    return %c0_i32, %c0_i32_0 : i32, i32
  }
  func.func @transform_3(%arg0: i32) -> (i32, i32) {
    %c0_i32 = arith.constant 0 : i32
    %c0_i32_0 = arith.constant 0 : i32
    %c0_i32_1 = arith.constant 0 : i32
    return %c0_i32, %c0_i32_0 : i32, i32
  }
  func.func @transform_4(%arg0: i32) -> (i32, i32) {
    %c0_i32 = arith.constant 0 : i32
    %c0_i32_0 = arith.constant 0 : i32
    %c0_i32_1 = arith.constant 0 : i32
    return %c0_i32, %c0_i32_0 : i32, i32
  }
  func.func @transform_5(%arg0: i32) -> (i32, i32, i32) {
    %c0_i32 = arith.constant 0 : i32
    %c0_i32_0 = arith.constant 0 : i32
    %c0_i32_1 = arith.constant 0 : i32
    return %arg0, %c0_i32, %c0_i32_0 : i32, i32, i32
  }
}

</mosaic_0001>

<llo_original>
// kernel: tpu_custom_call.1
$region0: #{tpu_custom_call.1}
  #allocation0 [shape = 'u32[]', space=smem, size = 0x4, offset = 0x4, fixed_abs, tag = 'smem constant byte address 0x4 - core index']
  #allocation1 [shape = 'u32[144,128]{1,0:T(1,128)}', space=vmem, size = 0x12000, scoped, tag = 'internal scratch']
  #allocation2 [shape = 'f32[1,8,512]{2,1,0:T(8,128)}', space=vmem, size = 0x4000, scoped, tag = 'scratch operand']
  #allocation3 [shape = 'f32[72,256]{1,0:T(8,128)}', space=vmem, size = 0x12000, scoped, tag = 'scratch operand']
  %s0 = inlined_call_operand.vmem [shape: f32[2,4,256], index: 0, kind: input, shape index: {}]
  %s1 = inlined_call_operand.vmem [shape: f32[4,1], index: 1, kind: input, shape index: {}]
  %s2 = inlined_call_operand.vmem [shape: f32[4,1], index: 2, kind: input, shape index: {}]
  %s3 = inlined_call_operand.vmem [shape: f32[8,72], index: 3, kind: input, shape index: {}]
  %s4 = inlined_call_operand.vmem [shape: f32[8,1], index: 4, kind: input, shape index: {}]
  %s5 = inlined_call_operand.hbm [shape: f32[2,8,256], index: 5, kind: output, shape index: {}]
  %s6 = sld [smem:[#allocation0]]
  $region53: #{tpu_custom_call.1} parent=0
    _
  %s8 = ssub.s32 1, %s6
  %s9 = scalar_select 0, %s8, %s6
  $region1: #{tpu_custom_call.1} parent=0
    #allocation4 [shape = 'u8[16384]{0}', space=vmem, size = 0x4000, scoped, tag = 'output window, operand 0']
    #allocation5 [shape = 's32[2]{0}', space=sflag, size = 0x8, scoped, tag = 'scoped memory for tpu_custom_call.1']
    %10 = vsyncpa [#allocation5], 0
    %s11 = scalar_lea.sflag [#allocation5], 1
    %12 = vsyncpa %s11, 0
    loop: start=0, step=1, limit=4
    $region2: #{tpu_custom_call.1} parent=1 // loop_pre_header
      _
    $region3: #{tpu_custom_call.1} parent=1 // loop_header
      %s14 = sphi 0, %s18
      %p15 = scmp.ge.s32.totalorder %s14, 4
      %s24 = sphi 0, %s26
      %s27 = sphi 0, %s24
      %s28 = sphi 0, %s27
      %s44 = sphi 0, %s28
      %s48 = sphi 0, %s48
      %s50 = sphi 0, %s48
      %s51 = sphi 0, %s50
      %s65 = sphi 0, %s51
      %s69 = sphi 0, %s69
      %s71 = sphi 0, %s69
      %s72 = sphi 0, %s71
      %s86 = sphi 0, %s72
      %s90 = sphi 0, %s90
      %s92 = sphi 0, %s90
      %s93 = sphi 0, %s92
      %s107 = sphi 0, %s93
      %s111 = sphi 0, %s111
      %s113 = sphi 0, %s111
      %s114 = sphi 0, %s113
      %s128 = sphi 0, %s114
      %s134 = sphi 0, %s136
      %s137 = sphi 0, %s134
      %s138 = sphi 0, %s137
      %s154 = sphi 0, %s138
    $region4: #{tpu_custom_call.1} parent=1 // loop_header_branch
      %17 = sbr.rel (%p15) target = $region8
    $region5: #{tpu_custom_call.1} parent=1 // loop_body
      %s19 = ssub.s32 %s14, 1
      %s20 = ssub.s32 %s14, 2
      %s21 = sadd.s32 %s14, 1
      %s22 = ssub.s32 %s14, %s21
      %p23 = scmp.eq.s32.totalorder %s22, 0
      %s25 = sadd.s32 %s24, 1
      %s26 = scalar_select %p23, %s24, %s25
      %p29 = pneg %p23
      %p30 = scmp.eq.s32.totalorder %s14, 1
      %p31 = por %p29, %p30
      %p32 = scmp.ne.s32.totalorder %s24, %s27
      %p33 = scmp.eq.s32.totalorder %s14, 0
      %p34 = por %p32, %p33
      %p35 = scmp.ne.s32.totalorder %s24, %s27
      %p36 = scmp.eq.s32.totalorder %s19, 1
      %p37 = por %p35, %p36
      %p38 = scmp.ne.s32.totalorder %s27, %s28
      %p39 = scmp.eq.s32.totalorder %s19, 0
      %p40 = por %p38, %p39
      %p41 = scmp.ne.s32.totalorder %s27, %s28
      %p42 = scmp.eq.s32.totalorder %s20, 1
      %p43 = por %p41, %p42
      %p45 = scmp.ne.s32.totalorder %s28, %s44
      %p46 = scmp.eq.s32.totalorder %s20, 0
      %p47 = por %p45, %p46
      %s49 = sadd.s32 %s48, 1
      %p52 = scmp.eq.s32.totalorder %s14, 1
      %p53 = scmp.ne.s32.totalorder %s48, %s50
      %p54 = scmp.eq.s32.totalorder %s14, 0
      %p55 = por %p53, %p54
      %p56 = scmp.ne.s32.totalorder %s48, %s50
      %p57 = scmp.eq.s32.totalorder %s19, 1
      %p58 = por %p56, %p57
      %p59 = scmp.ne.s32.totalorder %s50, %s51
      %p60 = scmp.eq.s32.totalorder %s19, 0
      %p61 = por %p59, %p60
      %p62 = scmp.ne.s32.totalorder %s50, %s51
      %p63 = scmp.eq.s32.totalorder %s20, 1
      %p64 = por %p62, %p63
      %p66 = scmp.ne.s32.totalorder %s51, %s65
      %p67 = scmp.eq.s32.totalorder %s20, 0
      %p68 = por %p66, %p67
      %s70 = sadd.s32 %s69, 1
      %p73 = scmp.eq.s32.totalorder %s14, 1
      %p74 = scmp.ne.s32.totalorder %s69, %s71
      %p75 = scmp.eq.s32.totalorder %s14, 0
      %p76 = por %p74, %p75
      %p77 = scmp.ne.s32.totalorder %s69, %s71
      %p78 = scmp.eq.s32.totalorder %s19, 1
      %p79 = por %p77, %p78
      %p80 = scmp.ne.s32.totalorder %s71, %s72
      %p81 = scmp.eq.s32.totalorder %s19, 0
      %p82 = por %p80, %p81
      %p83 = scmp.ne.s32.totalorder %s71, %s72
      %p84 = scmp.eq.s32.totalorder %s20, 1
      %p85 = por %p83, %p84
      %p87 = scmp.ne.s32.totalorder %s72, %s86
      %p88 = scmp.eq.s32.totalorder %s20, 0
      %p89 = por %p87, %p88
      %s91 = sadd.s32 %s90, 1
      %p94 = scmp.eq.s32.totalorder %s14, 1
      %p95 = scmp.ne.s32.totalorder %s90, %s92
      %p96 = scmp.eq.s32.totalorder %s14, 0
      %p97 = por %p95, %p96
      %p98 = scmp.ne.s32.totalorder %s90, %s92
      %p99 = scmp.eq.s32.totalorder %s19, 1
      %p100 = por %p98, %p99
      %p101 = scmp.ne.s32.totalorder %s92, %s93
      %p102 = scmp.eq.s32.totalorder %s19, 0
      %p103 = por %p101, %p102
      %p104 = scmp.ne.s32.totalorder %s92, %s93
      %p105 = scmp.eq.s32.totalorder %s20, 1
      %p106 = por %p104, %p105
      %p108 = scmp.ne.s32.totalorder %s93, %s107
      %p109 = scmp.eq.s32.totalorder %s20, 0
      %p110 = por %p108, %p109
      %s112 = sadd.s32 %s111, 1
      %p115 = scmp.eq.s32.totalorder %s14, 1
      %p116 = scmp.ne.s32.totalorder %s111, %s113
      %p117 = scmp.eq.s32.totalorder %s14, 0
      %p118 = por %p116, %p117
      %p119 = scmp.ne.s32.totalorder %s111, %s113
      %p120 = scmp.eq.s32.totalorder %s19, 1
      %p121 = por %p119, %p120
      %p122 = scmp.ne.s32.totalorder %s113, %s114
      %p123 = scmp.eq.s32.totalorder %s19, 0
      %p124 = por %p122, %p123
      %p125 = scmp.ne.s32.totalorder %s113, %s114
      %p126 = scmp.eq.s32.totalorder %s20, 1
      %p127 = por %p125, %p126
      %p129 = scmp.ne.s32.totalorder %s114, %s128
      %p130 = scmp.eq.s32.totalorder %s20, 0
      %p131 = por %p129, %p130
      %s132 = ssub.s32 %s14, %s21
      %p133 = scmp.eq.s32.totalorder %s132, 0
      %s135 = sadd.s32 %s134, 1
      %s136 = scalar_select %p133, %s134, %s135
      %p139 = pneg %p133
      %p140 = scmp.eq.s32.totalorder %s14, 1
      %p141 = por %p139, %p140
      %p142 = scmp.ne.s32.totalorder %s134, %s137
      %p143 = scmp.eq.s32.totalorder %s14, 0
      %p144 = por %p142, %p143
      %p145 = scmp.ne.s32.totalorder %s134, %s137
      %p146 = scmp.eq.s32.totalorder %s19, 1
      %p147 = por %p145, %p146
      %p148 = scmp.ne.s32.totalorder %s137, %s138
      %p149 = scmp.eq.s32.totalorder %s19, 0
      %p150 = por %p148, %p149
      %p151 = scmp.ne.s32.totalorder %s137, %s138
      %p152 = scmp.eq.s32.totalorder %s20, 1
      %p153 = por %p151, %p152
      %p155 = scmp.ne.s32.totalorder %s138, %s154
      %p156 = scmp.eq.s32.totalorder %s20, 0
      %p157 = por %p155, %p156
      %p158 = scmp.le.s32.totalorder 1, %s14
      %p159 = scmp.lt.s32.totalorder %s14, 3
      %p160 = pnand %p158, %p159
      %p161 = pneg %p160
      // Predicated region
      $region9: #{tpu_custom_call.1} parent=5 // pred_check
        _
      $region10: #{tpu_custom_call.1} parent=5 // pred_check_branch
        %163 = sbr.rel (%p160) target = $region12
      $region11: #{tpu_custom_call.1} parent=5 // pred_region
        %s164 = ssub.s32 %s14, 1
        // Predicated region
        $region13: #{tpu_custom_call.1} parent=11 // pred_check
          %p165 = pneg %p61
        $region14: #{tpu_custom_call.1} parent=11 // pred_check_branch
          %167 = sbr.rel (%p165) target = $region16
        $region15: #{tpu_custom_call.1} parent=11 // pred_region
          _
        $region16: #{tpu_custom_call.1} parent=11 // pred_fallthru
          _
        // Predicated region
        $region17: #{tpu_custom_call.1} parent=11 // pred_check
          %p168 = pneg %p82
        $region18: #{tpu_custom_call.1} parent=11 // pred_check_branch
          %170 = sbr.rel (%p168) target = $region20
        $region19: #{tpu_custom_call.1} parent=11 // pred_region
          _
        $region20: #{tpu_custom_call.1} parent=11 // pred_fallthru
          _
        // Predicated region
        $region21: #{tpu_custom_call.1} parent=11 // pred_check
          %p171 = pneg %p103
        $region22: #{tpu_custom_call.1} parent=11 // pred_check_branch
          %173 = sbr.rel (%p171) target = $region24
        $region23: #{tpu_custom_call.1} parent=11 // pred_region
          _
        $region24: #{tpu_custom_call.1} parent=11 // pred_fallthru
          _
        // Predicated region
        $region25: #{tpu_custom_call.1} parent=11 // pred_check
          %p174 = pneg %p124
        $region26: #{tpu_custom_call.1} parent=11 // pred_check_branch
          %176 = sbr.rel (%p174) target = $region28
        $region27: #{tpu_custom_call.1} parent=11 // pred_region
          _
        $region28: #{tpu_custom_call.1} parent=11 // pred_fallthru
          _
      $region12: #{tpu_custom_call.1} parent=5 // pred_fallthru
        _
      %p177 = scmp.lt.s32.totalorder %s14, 2
      // Predicated region
      $region29: #{tpu_custom_call.1} parent=5 // pred_check
        %p178 = pneg %p177
      $region30: #{tpu_custom_call.1} parent=5 // pred_check_branch
        %180 = sbr.rel (%p178) target = $region32
      $region31: #{tpu_custom_call.1} parent=5 // pred_region
        // Predicated region
        $region33: #{tpu_custom_call.1} parent=31 // pred_check
          %p181 = pneg %p34
        $region34: #{tpu_custom_call.1} parent=31 // pred_check_branch
          %183 = sbr.rel (%p181) target = $region36
        $region35: #{tpu_custom_call.1} parent=31 // pred_region
          %p184 = scmp.lt.s32.totalorder %s14, 1
          %s185 = scalar_select %p184, %s14, 1
          %s186 = smul.addr %s185, 2
          %s187 = smul.addr %s186, 4
          %s188 = scalar_lea.vmem %s0, %s187
        $region36: #{tpu_custom_call.1} parent=31 // pred_fallthru
          _
      $region32: #{tpu_custom_call.1} parent=5 // pred_fallthru
        _
      %p189 = scmp.le.s32.totalorder 1, %s14
      %p190 = scmp.lt.s32.totalorder %s14, 3
      %p191 = pnand %p189, %p190
      %p192 = pneg %p191
      // Predicated region
      $region37: #{tpu_custom_call.1} parent=5 // pred_check
        _
      $region38: #{tpu_custom_call.1} parent=5 // pred_check_branch
        %194 = sbr.rel (%p191) target = $region40
      $region39: #{tpu_custom_call.1} parent=5 // pred_region
        %s195 = ssub.s32 %s14, 1
        %p196 = scmp.lt.s32.totalorder %s19, 1
        %s197 = scalar_select %p196, %s19, 1
        %s198 = smul.addr %s197, 2
        %s199 = smul.addr %s198, 4
        %s200 = scalar_lea.vmem %s0, %s199
        %p201 = pneg %p40
        %p202 = pneg %p37
        %p203 = pneg %p61
        %p204 = pneg %p58
        %p205 = pneg %p82
        %p206 = pneg %p79
        %p207 = pneg %p103
        %p208 = pneg %p100
        %p209 = pneg %p124
        %p210 = pneg %p121
        %p211 = pneg %p150
        %p212 = pneg %p147
        %s213 = sand.u32 %s137, 1
        %s214 = scalar_lea.sflag [#allocation5], %s213
        %s215 = sand.u32 %s137, 1
        %s216 = smul.addr %s215, 16
        %s217 = scalar_lea.vmem [#allocation4], %s216
        %p218 = scmp.lt.s32.totalorder %s19, 1
        %s219 = scalar_select %p218, %s19, 1
        %s220 = smul.addr %s219, 2
        %s221 = smul.addr %s220, 4
        %s222 = scalar_lea.vmem %s0, %s221
        %223 = vst [vmem:[#allocation2] sm:$0xff] 0.0
        %224 = vst [vmem:[#allocation2 + $0x8] sm:$0xff] 0.0
        %225 = vst [vmem:[#allocation2 + $0x10] sm:$0xff] 0.0
        %226 = vst [vmem:[#allocation2 + $0x18] sm:$0xff] 0.0
        %v227 = vld [vmem:[%s1] sm:$0xf]
        %v228 = vld [vmem:[%s2] sm:$0xf]
        %v229 = vld [vmem:[%s222] sm:$0xff]
        %231 = vset.pattern.permute.xlu0 0
        %232 = vperm.xlu0 %231, %v227
        %v233 = vpop.permute.xlu0 %232
        %v235 = vunpack.c.l.s4 839922192
        %v236 = vunpack.c.0.s8 %v235
        %v237 = vlaneseq
        %v238 = vshrl.u32 %v237, 7
        %v239 = vsub.s32 %v236, %v238
        %v240 = vrot.slane %v233, %v239
        %v242 = vmul.f32 %v229, %v240
        %244 = vset.pattern.permute.xlu0 0
        %245 = vperm.xlu0 %244, %v228
        %v246 = vpop.permute.xlu0 %245
        %v248 = vunpack.c.l.s4 839922192
        %v249 = vunpack.c.0.s8 %v248
        %v250 = vlaneseq
        %v251 = vshrl.u32 %v250, 7
        %v252 = vsub.s32 %v249, %v251
        %v253 = vrot.slane %v246, %v252
        %v255 = vadd.f32 %v242, %v253
        %v256 = vmax.f32 %v255, 0.0
        %v258 = vcombine.high %v256, %v256
        %260 = vst [vmem:[#allocation2 + $0x8] sm:$0xf] %v256
        %261 = vst [vmem:[#allocation2 + $0x10] sm:$0xf] %v258
        %v262 = vlaneseq
        %v263 = vand.u32 %v262, 127
        %v264 = vadd.s32 %v263, 128
        %vm265 = vcmp.lt.s32.totalorder %v263, 0
        %v266 = vsub.s32 0, %v263
        %v267 = vsel %vm265, %v266, %v263
        %v268 = vshrl.u32 %v267, 4
        %v269 = vand.u32 %v267, 15
        %v270 = vsub.s32 0, %v269
        %v271 = vsel %vm265, %v270, %v269
        %vm272 = vcmp.lt.s32.totalorder %v264, 0
        %v273 = vsub.s32 0, %v264
        %v274 = vsel %vm272, %v273, %v264
        %v275 = vshrl.u32 %v274, 4
        %v276 = vand.u32 %v274, 15
        %v277 = vsub.s32 0, %v276
        %v278 = vsel %vm272, %v277, %v276
        %vm279 = vcmp.ne.s32.totalorder %v271, 0
        %vm280 = vcmp.ne.s32.totalorder %v278, 0
        %vm281 = vcmp.lt.s32.totalorder %v271, 0
        %vm282 = vcmp.lt.s32.totalorder %v278, 0
        %vm283 = vmand %vm281, %vm279
        %vm284 = vmand %vm282, %vm280
        %v285 = vadd.s32 %v271, 16
        %v286 = vadd.s32 %v278, 16
        %v287 = vsel %vm283, %v285, %v271
        %v288 = vsel %vm284, %v286, %v278
        %vm289 = vcmp.ne.s32.totalorder %v287, 0
        %vm290 = vcmp.ne.s32.totalorder %v288, 0
        %vm291 = vcmp.ne.s32.totalorder %v287, 15
        %vm292 = vcmp.ne.s32.totalorder %v288, 15
        %v293 = vld [vmem:[#allocation2] sm:$0xff]
        %v294 = vld [vmem:[#allocation2 + $0x8] sm:$0xff]
        %v295 = vld [vmem:[#allocation2 + $0x10] sm:$0xff]
        %v296 = vsel %vm289, 1, 0
        %v297 = vsel %vm290, 1, 0
        %vm298 = vcmp.eq.s32.totalorder %v296, 1
        %vm299 = vcmp.eq.s32.totalorder %v297, 1
        %303 = vrot.lane.b32.xlu0 %v293, 17
        %v304 = vpop.permute.xlu0 %303
        %305 = vrot.lane.b32.xlu0 %v294, 17
        %v306 = vpop.permute.xlu0 %305
        %307 = vrot.lane.b32.xlu0 %v295, 17
        %v308 = vpop.permute.xlu0 %307
        %vm309 = vcmask 138240
        %v310 = vsel %vm309, %v304, %v306
        %v311 = vsel %vm309, %v306, %v308
        %v314 = vsel %vm298, %v310, 0.0
        %v315 = vsel %vm299, %v311, 0.0
        %316 = vst [vmem:[#allocation3] sm:$0xff] %v314
        %317 = vst [vmem:[#allocation3 + $0x8] sm:$0xff] %v315
        %v318 = vld [vmem:[#allocation2] sm:$0xff]
        %v319 = vld [vmem:[#allocation2 + $0x8] sm:$0xff]
        %v320 = vld [vmem:[#allocation2 + $0x10] sm:$0xff]
        %324 = vrot.lane.b32.xlu0 %v318, 16
        %v325 = vpop.permute.xlu0 %324
        %326 = vrot.lane.b32.xlu0 %v319, 16
        %v327 = vpop.permute.xlu0 %326
        %328 = vrot.lane.b32.xlu0 %v320, 16
        %v329 = vpop.permute.xlu0 %328
        %vm330 = vcmask 130048
        %v331 = vsel %vm330, %v325, %v327
        %v332 = vsel %vm330, %v327, %v329
        %335 = vst [vmem:[#allocation3 + $0x10] sm:$0xff] %v331
        %336 = vst [vmem:[#allocation3 + $0x18] sm:$0xff] %v332
        %v337 = vld [vmem:[#allocation2] sm:$0xff]
        %v338 = vld [vmem:[#allocation2 + $0x8] sm:$0xff]
        %v339 = vld [vmem:[#allocation2 + $0x10] sm:$0xff]
        %v340 = vsel %vm291, 1, 0
        %v341 = vsel %vm292, 1, 0
        %vm342 = vcmp.eq.s32.totalorder %v340, 1
        %vm343 = vcmp.eq.s32.totalorder %v341, 1
        %347 = vrot.lane.b32.xlu0 %v337, 15
        %v348 = vpop.permute.xlu0 %347
        %349 = vrot.lane.b32.xlu0 %v338, 15
        %v350 = vpop.permute.xlu0 %349
        %351 = vrot.lane.b32.xlu0 %v339, 15
        %v352 = vpop.permute.xlu0 %351
        %vm353 = vcmask 121856
        %v354 = vsel %vm353, %v348, %v350
        %v355 = vsel %vm353, %v350, %v352
        %v358 = vsel %vm342, %v354, 0.0
        %v359 = vsel %vm343, %v355, 0.0
        %360 = vst [vmem:[#allocation3 + $0x20] sm:$0xff] %v358
        %361 = vst [vmem:[#allocation3 + $0x28] sm:$0xff] %v359
        %v362 = vld [vmem:[#allocation2] sm:$0xff]
        %v363 = vld [vmem:[#allocation2 + $0x8] sm:$0xff]
        %v364 = vld [vmem:[#allocation2 + $0x10] sm:$0xff]
        %368 = vrot.lane.b32.xlu0 %v362, 1
        %v369 = vpop.permute.xlu0 %368
        %370 = vrot.lane.b32.xlu0 %v363, 1
        %v371 = vpop.permute.xlu0 %370
        %372 = vrot.lane.b32.xlu0 %v364, 1
        %v373 = vpop.permute.xlu0 %372
        %vm374 = vcmask 7168
        %v375 = vsel %vm374, %v369, %v371
        %v376 = vsel %vm374, %v371, %v373
        %v379 = vsel %vm298, %v375, 0.0
        %v380 = vsel %vm299, %v376, 0.0
        %381 = vst [vmem:[#allocation3 + $0x30] sm:$0xff] %v379
        %382 = vst [vmem:[#allocation3 + $0x38] sm:$0xff] %v380
        %v383 = vld [vmem:[#allocation2 + $0x8] sm:$0xff]
        %v384 = vld [vmem:[#allocation2 + $0x10] sm:$0xff]
        %385 = vst [vmem:[#allocation3 + $0x40] sm:$0xff] %v383
        %386 = vst [vmem:[#allocation3 + $0x48] sm:$0xff] %v384
        %v387 = vld [vmem:[#allocation2 + $0x8] sm:$0xff]
        %v388 = vld [vmem:[#allocation2 + $0x10] sm:$0xff]
        %v389 = vld [vmem:[#allocation2 + $0x18] sm:$0xff]
        %393 = vrot.lane.b32.xlu0 %v387, 127
        %v394 = vpop.permute.xlu0 %393
        %395 = vrot.lane.b32.xlu0 %v388, 127
        %v396 = vpop.permute.xlu0 %395
        %397 = vrot.lane.b32.xlu0 %v389, 127
        %v398 = vpop.permute.xlu0 %397
        %vm399 = vcmask 1039360
        %v400 = vsel %vm399, %v394, %v396
        %v401 = vsel %vm399, %v396, %v398
        %v404 = vsel %vm342, %v400, 0.0
        %v405 = vsel %vm343, %v401, 0.0
        %406 = vst [vmem:[#allocation3 + $0x50] sm:$0xff] %v404
        %407 = vst [vmem:[#allocation3 + $0x58] sm:$0xff] %v405
        %v408 = vld [vmem:[#allocation2 + $0x8] sm:$0xff]
        %v409 = vld [vmem:[#allocation2 + $0x10] sm:$0xff]
        %v410 = vld [vmem:[#allocation2 + $0x18] sm:$0xff]
        %414 = vrot.lane.b32.xlu0 %v408, 113
        %v415 = vpop.permute.xlu0 %414
        %416 = vrot.lane.b32.xlu0 %v409, 113
        %v417 = vpop.permute.xlu0 %416
        %418 = vrot.lane.b32.xlu0 %v410, 113
        %v419 = vpop.permute.xlu0 %418
        %vm420 = vcmask 924672
        %v421 = vsel %vm420, %v415, %v417
        %v422 = vsel %vm420, %v417, %v419
        %v425 = vsel %vm298, %v421, 0.0
        %v426 = vsel %vm299, %v422, 0.0
        %427 = vst [vmem:[#allocation3 + $0x60] sm:$0xff] %v425
        %428 = vst [vmem:[#allocation3 + $0x68] sm:$0xff] %v426
        %v429 = vld [vmem:[#allocation2 + $0x8] sm:$0xff]
        %v430 = vld [vmem:[#allocation2 + $0x10] sm:$0xff]
        %v431 = vld [vmem:[#allocation2 + $0x18] sm:$0xff]
        %435 = vrot.lane.b32.xlu0 %v429, 112
        %v436 = vpop.permute.xlu0 %435
        %437 = vrot.lane.b32.xlu0 %v430, 112
        %v438 = vpop.permute.xlu0 %437
        %439 = vrot.lane.b32.xlu0 %v431, 112
        %v440 = vpop.permute.xlu0 %439
        %vm441 = vcmask 916480
        %v442 = vsel %vm441, %v436, %v438
        %v443 = vsel %vm441, %v438, %v440
        %446 = vst [vmem:[#allocation3 + $0x70] sm:$0xff] %v442
        %447 = vst [vmem:[#allocation3 + $0x78] sm:$0xff] %v443
        %v448 = vld [vmem:[#allocation2 + $0x8] sm:$0xff]
        %v449 = vld [vmem:[#allocation2 + $0x10] sm:$0xff]
        %v450 = vld [vmem:[#allocation2 + $0x18] sm:$0xff]
        %454 = vrot.lane.b32.xlu0 %v448, 111
        %v455 = vpop.permute.xlu0 %454
        %456 = vrot.lane.b32.xlu0 %v449, 111
        %v457 = vpop.permute.xlu0 %456
        %458 = vrot.lane.b32.xlu0 %v450, 111
        %v459 = vpop.permute.xlu0 %458
        %vm460 = vcmask 908288
        %v461 = vsel %vm460, %v455, %v457
        %v462 = vsel %vm460, %v457, %v459
        %v465 = vsel %vm342, %v461, 0.0
        %v466 = vsel %vm343, %v462, 0.0
        %467 = vst [vmem:[#allocation3 + $0x80] sm:$0xff] %v465
        %468 = vst [vmem:[#allocation3 + $0x88] sm:$0xff] %v466
        %v469 = vld [vmem:[%s3] sm:$0xff]
        %v470 = vld [vmem:[#allocation3] sm:$0xff]
        %v471 = vld [vmem:[#allocation3 + $0x8] sm:$0xff]
        %v472 = vld [vmem:[#allocation3 + $0x10] sm:$0xff]
        %v473 = vld [vmem:[#allocation3 + $0x18] sm:$0xff]
        %v474 = vld [vmem:[#allocation3 + $0x20] sm:$0xff]
        %v475 = vld [vmem:[#allocation3 + $0x28] sm:$0xff]
        %v476 = vld [vmem:[#allocation3 + $0x30] sm:$0xff]
        %v477 = vld [vmem:[#allocation3 + $0x38] sm:$0xff]
        %v478 = vld [vmem:[#allocation3 + $0x40] sm:$0xff]
        %v479 = vld [vmem:[#allocation3 + $0x48] sm:$0xff]
        %v480 = vld [vmem:[#allocation3 + $0x50] sm:$0xff]
        %v481 = vld [vmem:[#allocation3 + $0x58] sm:$0xff]
        %v482 = vld [vmem:[#allocation3 + $0x60] sm:$0xff]
        %v483 = vld [vmem:[#allocation3 + $0x68] sm:$0xff]
        %v484 = vld [vmem:[#allocation3 + $0x70] sm:$0xff]
        %v485 = vld [vmem:[#allocation3 + $0x78] sm:$0xff]
        %v486 = vld [vmem:[#allocation3 + $0x80] sm:$0xff]
        %v487 = vld [vmem:[#allocation3 + $0x88] sm:$0xff]
        %v488 = vld [vmem:[%s4] sm:$0xff]
        %490 = vset.pattern.permute.xlu0 0
        %491 = vperm.xlu0 %490, %v488
        %v492 = vpop.permute.xlu0 %491
        %vm494 = vcmask 588800
        %v496 = vsel %vm494, %v469, 0
        %498 = vmatprep.subr.mxu0 %v471
        %499 = vmatpush1.msra.mxu0 %v470
        %500 = vmatprep.subr.mxu0 %v473
        %501 = vmatpush1.msra.mxu0 %v472
        %502 = vmatprep.subr.mxu0 %v475
        %503 = vmatpush1.msra.mxu0 %v474
        %504 = vmatprep.subr.mxu0 %v477
        %505 = vmatpush1.msra.mxu0 %v476
        %506 = vmatprep.subr.mxu0 %v479
        %507 = vmatpush1.msra.mxu0 %v478
        %508 = vmatprep.subr.mxu0 %v481
        %509 = vmatpush1.msra.mxu0 %v480
        %510 = vmatprep.subr.mxu0 %v483
        %511 = vmatpush1.msra.mxu0 %v482
        %512 = vmatprep.subr.mxu0 %v485
        %513 = vmatpush1.msra.mxu0 %v484
        %514 = vmatprep.subr.mxu0 %v487
        %515 = vmatpush1.msra.mxu0 %v486
        %516 = vmatprep.subr.mxu0 0.0
        %517 = vmatpush1.msra.mxu0 0.0
        %518 = vmatprep.subr.mxu0 0.0
        %519 = vmatpush1.msra.mxu0 0.0
        %520 = vmatprep.subr.mxu0 0.0
        %521 = vmatpush1.msra.mxu0 0.0
        %522 = vmatprep.subr.mxu0 0.0
        %523 = vmatpush1.msra.mxu0 0.0
        %524 = vmatprep.subr.mxu0 0.0
        %525 = vmatpush1.msra.mxu0 0.0
        %526 = vmatprep.subr.mxu0 0.0
        %527 = vmatpush1.msra.mxu0 0.0
        %528 = vmatprep.subr.mxu0 0.0
        %529 = vmatpush1.msra.mxu0 0.0
        %530 = vmatprep.subr.mxu0 0.0
        %531 = vmatpush1.msra.mxu0 0.0
        %532 = vmatprep.subr.mxu0 0.0
        %533 = vmatpush1.msra.mxu0 0.0
        %534 = vmatprep.subr.mxu0 0.0
        %535 = vmatpush1.msra.mxu0 0.0
        %536 = vmatprep.subr.mxu0 0.0
        %537 = vmatpush1.msra.mxu0 0.0
        %538 = vmatprep.subr.mxu0 0.0
        %539 = vmatpush1.msra.mxu0 0.0
        %540 = vmatprep.subr.mxu0 0.0
        %541 = vmatpush1.msra.mxu0 0.0
        %542 = vmatprep.subr.mxu0 0.0
        %543 = vmatpush1.msra.mxu0 0.0
        %544 = vmatprep.subr.mxu0 0.0
        %545 = vmatpush1.msra.mxu0 0.0
        %546 = vmatprep.subr.mxu0 0.0
        %547 = vmatpush1.msra.mxu0 0.0
        %548 = vmatprep.subr.mxu0 0.0
        %549 = vmatpush1.msra.mxu0 0.0
        %550 = vmatprep.subr.mxu0 0.0
        %551 = vmatpush1.msra.mxu0 0.0
        %552 = vmatprep.subr.mxu0 0.0
        %553 = vmatpush1.msra.mxu0 0.0
        %554 = vmatprep.subr.mxu0 0.0
        %555 = vmatpush1.msra.mxu0 0.0
        %556 = vmatprep.subr.mxu0 0.0
        %557 = vmatpush1.msra.mxu0 0.0
        %558 = vmatprep.subr.mxu0 0.0
        %559 = vmatpush1.msra.mxu0 0.0
        %560 = vmatprep.subr.mxu0 0.0
        %561 = vmatpush1.msra.mxu0 0.0
        %562 = vmatprep.mubr.f32.mxu0 0.0
        %563 = vmatmul.mubr.f32.gmra.mrb[0].mxu0 %v496
        %v564 = vpop.f32.mrb[0].mxu0
        %v565 = vadd.f32 %v492, %v564
        %v566 = vpop.f32.mrb[0].mxu0
        %v567 = vadd.f32 %v492, %v566
        %568 = vdwg.mxu0
        %569 = vst [vmem:[%s217] sm:$0xff] %v565
        %570 = vst [vmem:[%s217 + $0x8] sm:$0xff] %v567
        %s571 = sand.u32 %s137, 1
        %s572 = scalar_lea.sflag [#allocation5], %s571
        %s573 = sand.u32 %s137, 1
        %s574 = smul.addr %s573, 16
        %s575 = scalar_lea.vmem [#allocation4], %s574
        // Predicated region
        $region41: #{tpu_custom_call.1} parent=39 // pred_check
          %p576 = pneg %p147
        $region42: #{tpu_custom_call.1} parent=39 // pred_check_branch
          %578 = sbr.rel (%p576) target = $region44
        $region43: #{tpu_custom_call.1} parent=39 // pred_region
          %s580 = ssub.s32 256, 256
          %581 = vsyncadd %s572, %s580
          %s582 = smul.addr %s19, 2
          %s583 = smul.addr %s582, 128
          %s584 = scalar_lea.hbm %s5, %s583
          %s586 = sshll.u32 %s575, 4
          %s587 = int_to_ptr.vmem [resolvable:$true] %s586
          %589 = dma.vmem_to_hbm [thread:$0]  %s587, 256, %s584, %s572
        $region44: #{tpu_custom_call.1} parent=39 // pred_fallthru
          _
      $region40: #{tpu_custom_call.1} parent=5 // pred_fallthru
        _
      %p590 = scmp.le.s32.totalorder 2, %s14
      // Predicated region
      $region45: #{tpu_custom_call.1} parent=5 // pred_check
        %p591 = pneg %p590
      $region46: #{tpu_custom_call.1} parent=5 // pred_check_branch
        %593 = sbr.rel (%p591) target = $region48
      $region47: #{tpu_custom_call.1} parent=5 // pred_region
        %s594 = ssub.s32 %s14, 2
        // Predicated region
        $region49: #{tpu_custom_call.1} parent=47 // pred_check
          %p595 = pneg %p153
        $region50: #{tpu_custom_call.1} parent=47 // pred_check_branch
          %597 = sbr.rel (%p595) target = $region52
        $region51: #{tpu_custom_call.1} parent=47 // pred_region
          %s598 = sand.u32 %s138, 1
          %s599 = scalar_lea.sflag [#allocation5], %s598
          %s600 = sand.u32 %s138, 1
          %s601 = smul.addr %s600, 16
          %s602 = scalar_lea.vmem [#allocation4], %s601
          %603 = dma.done %s599, 256
        $region52: #{tpu_custom_call.1} parent=47 // pred_fallthru
          _
      $region48: #{tpu_custom_call.1} parent=5 // pred_fallthru
        _
    $region6: #{tpu_custom_call.1} parent=1 // loop_footer
      %s18 = sadd.s32 1, %s14
    $region7: #{tpu_custom_call.1} parent=1 // loop_footer_branch
      %13 = sbr.rel target = $region3
    $region8: #{tpu_custom_call.1} parent=1 // loop_exit
      _
    %604 = vsyncpa [#allocation5], 1
    %s605 = scalar_lea.sflag [#allocation5], 1
    %606 = vsyncpa %s605, 1

</llo_original>
